<compile_context>
chip_gen: v7x
topology: tpu7x:2x2x1
jax: 0.10.0
libtpu: 0.0.40
codegen_flags: <defaults>
</compile_context>

<pallas_src>
import functools

import jax
import jax.numpy as jnp
from jax.experimental import pallas as pl
from jax.experimental.pallas import tpu as pltpu

LANES = 128
SUBLANES = 8
BLOCK_BYTES = 4 * 1024 * 1024        # per-input, per-step DMA byte budget
VMEM_LIMIT_BYTES = 32 * 1024 * 1024  # 2 inputs x 2 buffers x 4 MiB + headroom
FOLD_WAYS = 8                        # independent partial chains in the fold


def _fold_rows(v, tile_rows):
    """Fold a (tile_rows, 128) f32 tile to an (8, 128) vreg with VPU adds."""
    n_groups = tile_rows // SUBLANES
    v3 = v.reshape(n_groups, SUBLANES, LANES)
    if n_groups % FOLD_WAYS == 0 and n_groups >= 2 * FOLD_WAYS:
        # Two-stage fold: FOLD_WAYS independent accumulation chains keep VALU
        # latency hidden under the per-step DMA even for very large tiles.
        v4 = v3.reshape(FOLD_WAYS, n_groups // FOLD_WAYS, SUBLANES, LANES)
        return jnp.sum(jnp.sum(v4, axis=1), axis=0)
    return jnp.sum(v3, axis=0)


def _loss_partial_kernel(pred_ref, target_ref, out_ref, *,
                         loss_type, rows, tile_rows, blocks_per_shard,
                         needs_mask):
    c = pl.program_id(0)   # shard axis ("parallel": split across TCs on v7x)
    i = pl.program_id(1)   # reduction axis ("arbitrary")

    @pl.when(i == 0)
    def _():
        out_ref[...] = jnp.zeros_like(out_ref)

    d = pred_ref[...].astype(jnp.float32) - target_ref[...].astype(jnp.float32)
    if loss_type == "l2":
        v = d * d
    elif loss_type == "l1":
        v = jnp.abs(d)
    else:
        raise NotImplementedError(
            f"Loss function [{loss_type}] is not implemented")

    if not needs_mask:
        out_ref[...] += _fold_rows(v, tile_rows)[None]
    else:
        # Only edge blocks (ragged last tile, or logical blocks past the end
        # of the shard-rounded range, which the index_map clamps) pay the
        # mask; interior blocks take the unmasked path.
        blk = c * blocks_per_shard + i                # logical block index
        is_edge = (blk + 1) * tile_rows > rows

        @pl.when(jnp.logical_not(is_edge))
        def _():
            out_ref[...] += _fold_rows(v, tile_rows)[None]

        @pl.when(is_edge)
        def _():
            row_ids = blk * tile_rows + jax.lax.broadcasted_iota(
                jnp.int32, (tile_rows, LANES), 0)
            vm = jnp.where(row_ids < rows, v, 0.0)
            out_ref[...] += _fold_rows(vm, tile_rows)[None]


def _num_tensorcores():
    """Best effort: 2 TensorCores per chip on v7x / v4-megacore, else 1."""
    try:
        dev = jax.devices()[0]
        if getattr(dev, "platform", "") != "tpu":
            return 1
        kind = str(getattr(dev, "device_kind", "")).lower()
    except Exception:
        return 1
    if "v7" in kind or "7x" in kind or "v4" in kind:
        return 2
    return 1


def pallas_loss(pred, target, loss_type="l2"):
    """mean-reduced L2 (MSE) or L1 loss over all elements of pred/target."""
    assert pred.shape == target.shape, "pred/target shape mismatch"
    if loss_type not in ("l2", "l1"):
        raise NotImplementedError(
            f"Loss function [{loss_type}] is not implemented")

    n_elems = pred.size
    itemsize = jnp.dtype(pred.dtype).itemsize
    pack = max(1, 4 // itemsize)          # sublane packing (bf16 -> 2, int8 -> 4)
    row_unit = SUBLANES * pack            # rows per fully-packed vreg group

    pred_flat = pred.reshape(-1)
    target_flat = target.reshape(-1)

    # Pad only when the flat size is not lane (128) divisible, or the tensor
    # is tiny (one packed slab).  Padded entries are zero in both tensors so
    # they contribute 0 to either loss.
    # TODO(synk): in-kernel lane-tail masking would remove this HBM copy for
    # the remaining non-128-divisible case as well.
    min_slab = row_unit * LANES
    if n_elems < min_slab:
        pad = min_slab - n_elems                       # negligible copy
    else:
        pad = (-n_elems) % LANES
    if pad:
        pred_flat = jnp.pad(pred_flat, (0, pad))
        target_flat = jnp.pad(target_flat, (0, pad))

    rows = pred_flat.size // LANES                     # >= row_unit
    pred2d = pred_flat.reshape(rows, LANES)
    target2d = target_flat.reshape(rows, LANES)

    # Dtype-aware tiling: fixed byte budget per input block; tile_rows is a
    # multiple of the packed sublane unit and never exceeds the row count, so
    # the block shape is always legal and ragged tiles are masked in-kernel.
    budget_rows = max(
        row_unit, (BLOCK_BYTES // (LANES * itemsize)) // row_unit * row_unit)
    tile_rows = min(budget_rows, (rows // row_unit) * row_unit)

    num_blocks = -(-rows // tile_rows)                 # ceil div (Python int)
    num_shards = min(_num_tensorcores(), num_blocks)   # 1 on v5e/v6e
    blocks_per_shard = -(-num_blocks // num_shards)
    needs_mask = (rows % tile_rows != 0) or \
                 (num_shards * blocks_per_shard != num_blocks)

    def in_index_map(c, i):
        # Clamp logical blocks past the end to the last real block; their
        # contribution is zeroed by the in-kernel row mask.
        blk = jnp.minimum(c * blocks_per_shard + i, num_blocks - 1)
        return (blk, 0)

    kernel = functools.partial(
        _loss_partial_kernel,
        loss_type=loss_type, rows=rows, tile_rows=tile_rows,
        blocks_per_shard=blocks_per_shard, needs_mask=needs_mask)

    flops_per_elem = 3 if loss_type == "l2" else 2     # sub + f(d) + accumulate
    cost = pl.CostEstimate(
        flops=flops_per_elem * pred2d.size,
        transcendentals=0,
        bytes_accessed=2 * pred2d.size * itemsize
                       + num_shards * SUBLANES * LANES * 4)

    partials = pl.pallas_call(
        kernel,
        out_shape=jax.ShapeDtypeStruct((num_shards, SUBLANES, LANES),
                                       jnp.float32),
        grid_spec=pltpu.PrefetchScalarGridSpec(
            num_scalar_prefetch=0,
            grid=(num_shards, blocks_per_shard),
            in_specs=[
                pl.BlockSpec((tile_rows, LANES), in_index_map),
                pl.BlockSpec((tile_rows, LANES), in_index_map),
            ],
            out_specs=pl.BlockSpec((1, SUBLANES, LANES),
                                   lambda c, i: (c, 0, 0)),
        ),
        compiler_params=pltpu.CompilerParams(
            dimension_semantics=("parallel", "arbitrary"),
            vmem_limit_bytes=VMEM_LIMIT_BYTES,
        ),
        cost_estimate=cost,
    )(pred2d, target2d)

    # One tiny cross-lane reduce + the mean division, outside the kernel.
    return (jnp.sum(partials) / jnp.float32(n_elems)).astype(jnp.float32)


if __name__ == "__main__":
    key = jax.random.PRNGKey(0)
    k1, k2 = jax.random.split(key)

    # Small NCHW shapes consistent with an image-to-image network output.
    pred = jax.random.normal(k1, (2, 4, 16, 16), dtype=jnp.float32)
    target = jax.random.normal(k2, (2, 4, 16, 16), dtype=jnp.float32)

    l2 = jax.block_until_ready(pallas_loss(pred, target, loss_type="l2"))
    l1 = jax.block_until_ready(pallas_loss(pred, target, loss_type="l1"))

    ref_l2 = jnp.mean((pred - target) ** 2)
    ref_l1 = jnp.mean(jnp.abs(pred - target))
    assert jnp.allclose(l2, ref_l2, rtol=1e-5, atol=1e-6), (l2, ref_l2)
    assert jnp.allclose(l1, ref_l1, rtol=1e-5, atol=1e-6), (l1, ref_l1)

    # Exercise the multi-block / ragged-tile (edge-masked) path too.
    k3, k4 = jax.random.split(k1)
    p2 = jax.random.normal(k3, (2, 2, 360, 365), dtype=jnp.float32)
    t2 = jax.random.normal(k4, (2, 2, 360, 365), dtype=jnp.float32)
    l2b = jax.block_until_ready(pallas_loss(p2, t2, loss_type="l2"))
    l1b = jax.block_until_ready(pallas_loss(p2, t2, loss_type="l1"))
    assert jnp.allclose(l2b, jnp.mean((p2 - t2) ** 2), rtol=1e-5, atol=1e-6)
    assert jnp.allclose(l1b, jnp.mean(jnp.abs(p2 - t2)), rtol=1e-5, atol=1e-6)

    print("KERNEL_OK")
</pallas_src>

<mosaic_0001>
module attributes {stable_mosaic.version = 11 : i64} {
  func.func @_loss_partial_kernel(%arg0: i32, %arg1: i32, %arg2: memref<16x128xf32, #tpu.memory_space<vmem>>, %arg3: memref<16x128xf32, #tpu.memory_space<vmem>>, %arg4: memref<1x8x128xf32, #tpu.memory_space<vmem>>) attributes {dimension_semantics = [#tpu.dimension_semantics<parallel>, #tpu.dimension_semantics<arbitrary>], iteration_bounds = array<i64: 1, 1>, scalar_prefetch = 0 : i64, scratch_operands = 0 : i64, tpu.core_type = #tpu.core_type<tc>, window_params = [{transform_indices = @transform_0, window_bounds = array<i64: 16, 128>}, {transform_indices = @transform_1, window_bounds = array<i64: 16, 128>}, {transform_indices = @transform_2, window_bounds = array<i64: 1, 8, 128>}]} {
    %c0_i32 = arith.constant 0 : i32
    %0 = arith.cmpi eq, %arg1, %c0_i32 : i32
    %1 = arith.extui %0 : i1 to i32
    %c0_i32_0 = arith.constant 0 : i32
    %2 = arith.cmpi ne, %1, %c0_i32_0 : i32
    scf.if %2 {
      %cst_10 = arith.constant 0.000000e+00 : f32
      %13 = vector.broadcast %cst_10 : f32 to vector<1x8x128xf32>
      %c0_11 = arith.constant 0 : index
      %c0_12 = arith.constant 0 : index
      %c0_13 = arith.constant 0 : index
      %14 = vector.load %arg4[%c0_11, %c0_12, %c0_13] : memref<1x8x128xf32, #tpu.memory_space<vmem>>, vector<1x8x128xf32>
      tpu.vector_store %arg4[%c0_11, %c0_12, %c0_13], %13 {strides = array<i32>} : memref<1x8x128xf32, #tpu.memory_space<vmem>>, vector<1x8x128xf32>,
    } else {
    }
    %c0 = arith.constant 0 : index
    %c0_1 = arith.constant 0 : index
    %3 = vector.load %arg2[%c0, %c0_1] : memref<16x128xf32, #tpu.memory_space<vmem>>, vector<16x128xf32>
    %c0_2 = arith.constant 0 : index
    %c0_3 = arith.constant 0 : index
    %4 = vector.load %arg3[%c0_2, %c0_3] : memref<16x128xf32, #tpu.memory_space<vmem>>, vector<16x128xf32>
    %5 = arith.subf %3, %4 : vector<16x128xf32>
    %6 = arith.mulf %5, %5 : vector<16x128xf32>
    %c0_4 = arith.constant 0 : index
    %c0_5 = arith.constant 0 : index
    %c0_6 = arith.constant 0 : index
    %7 = vector.load %arg4[%c0_4, %c0_5, %c0_6] : memref<1x8x128xf32, #tpu.memory_space<vmem>>, vector<1x8x128xf32>
    %8 = vector.shape_cast %6 : vector<16x128xf32> to vector<2x8x128xf32>
    %cst = arith.constant dense<0.000000e+00> : vector<8x128xf32>
    %9 = vector.multi_reduction <add>, %8, %cst [0] : vector<2x8x128xf32> to vector<8x128xf32>
    %10 = vector.shape_cast %9 : vector<8x128xf32> to vector<1x8x128xf32>
    %11 = arith.addf %7, %10 : vector<1x8x128xf32>
    %c0_7 = arith.constant 0 : index
    %c0_8 = arith.constant 0 : index
    %c0_9 = arith.constant 0 : index
    %12 = vector.load %arg4[%c0_7, %c0_8, %c0_9] : memref<1x8x128xf32, #tpu.memory_space<vmem>>, vector<1x8x128xf32>
    tpu.vector_store %arg4[%c0_7, %c0_8, %c0_9], %11 {strides = array<i32>} : memref<1x8x128xf32, #tpu.memory_space<vmem>>, vector<1x8x128xf32>,
    return
  }
  func.func @transform_0(%arg0: i32, %arg1: i32) -> (i32, i32) {
    %c1_i32 = arith.constant 1 : i32
    %0 = arith.muli %arg0, %c1_i32 : i32
    %1 = arith.addi %0, %arg1 : i32
    %c0_i32 = arith.constant 0 : i32
    %2 = arith.minsi %1, %c0_i32 : i32
    %c0_i32_0 = arith.constant 0 : i32
    %c0_i32_1 = arith.constant 0 : i32
    return %2, %c0_i32_0 : i32, i32
  }
  func.func @transform_1(%arg0: i32, %arg1: i32) -> (i32, i32) {
    %c1_i32 = arith.constant 1 : i32
    %0 = arith.muli %arg0, %c1_i32 : i32
    %1 = arith.addi %0, %arg1 : i32
    %c0_i32 = arith.constant 0 : i32
    %2 = arith.minsi %1, %c0_i32 : i32
    %c0_i32_0 = arith.constant 0 : i32
    %c0_i32_1 = arith.constant 0 : i32
    return %2, %c0_i32_0 : i32, i32
  }
  func.func @transform_2(%arg0: i32, %arg1: i32) -> (i32, i32, i32) {
    %c0_i32 = arith.constant 0 : i32
    %c0_i32_0 = arith.constant 0 : i32
    %c0_i32_1 = arith.constant 0 : i32
    return %arg0, %c0_i32, %c0_i32_0 : i32, i32, i32
  }
}

</mosaic_0001>

<llo_original>
// kernel: tpu_custom_call.1
$region0: #{tpu_custom_call.1}
  #allocation0 [shape = 'u32[]', space=smem, size = 0x4, offset = 0x4, fixed_abs, tag = 'smem constant byte address 0x4 - core index']
  #allocation1 [shape = 'u32[144,128]{1,0:T(1,128)}', space=vmem, size = 0x12000, scoped, tag = 'internal scratch']
  %s0 = inlined_call_operand.hbm [shape: f32[16,128], index: 0, kind: input, shape index: {}]
  %s1 = inlined_call_operand.hbm [shape: f32[16,128], index: 1, kind: input, shape index: {}]
  %s2 = inlined_call_operand.hbm [shape: f32[1,8,128], index: 2, kind: output, shape index: {}]
  %s3 = sld [smem:[#allocation0]]
  $region30: #{tpu_custom_call.1} parent=0
    _
  %s5 = ssub.s32 1, %s3
  %s6 = scalar_select 0, %s5, %s3
  $region1: #{tpu_custom_call.1} parent=0
    #allocation2 [shape = 'u8[8192]{0}', space=vmem, size = 0x2000, scoped, tag = 'input window, operand 0, single buffered']
    #allocation3 [shape = 's32[1]{0}', space=sflag, size = 0x4, scoped, tag = 'scoped memory for tpu_custom_call.1']
    #allocation4 [shape = 's32[1]{0}', space=sflag, size = 0x4, scoped, tag = 'scoped memory for tpu_custom_call.1']
    #allocation5 [shape = 'u8[8192]{0}', space=vmem, size = 0x2000, scoped, tag = 'input window, operand 1, single buffered']
    #allocation6 [shape = 's32[1]{0}', space=sflag, size = 0x4, scoped, tag = 'scoped memory for tpu_custom_call.1']
    #allocation7 [shape = 'u8[4096]{0}', space=vmem, size = 0x1000, scoped, tag = 'output window, operand 0, single buffered']
    %7 = vsyncpa [#allocation3], 0
    %8 = vsyncpa [#allocation6], 0
    %9 = vsyncpa [#allocation4], 0
    // Predicated region
    $region2: #{tpu_custom_call.1} parent=1 // pred_check
      _
    $region3: #{tpu_custom_call.1} parent=1 // pred_check_branch
      %11 = sbr.rel (0) target = $region5
    $region4: #{tpu_custom_call.1} parent=1 // pred_region
      %s12 = sadd.s32 0, 0
      %p13 = scmp.lt.s32.totalorder %s12, 0
      %s14 = scalar_select %p13, %s12, 0
      %s15 = smul.u32 2, %s14
      %s17 = ssub.s32 256, 256
      %18 = vsyncadd [#allocation3], %s17
      %s19 = smul.addr %s15, 128
      %s20 = scalar_lea.hbm %s0, %s19
      %s21 = sshll.u32 [#allocation2], 4
      %s22 = int_to_ptr.vmem [resolvable:$true] %s21
      %27 = dma.hbm_to_vmem [thread:$0]  %s20, 256, %s22, [#allocation3], 128, 128, 8
    $region5: #{tpu_custom_call.1} parent=1 // pred_fallthru
      _
    // Predicated region
    $region6: #{tpu_custom_call.1} parent=1 // pred_check
      _
    $region7: #{tpu_custom_call.1} parent=1 // pred_check_branch
      %29 = sbr.rel (0) target = $region9
    $region8: #{tpu_custom_call.1} parent=1 // pred_region
      %s30 = sadd.s32 0, 0
      %p31 = scmp.lt.s32.totalorder %s30, 0
      %s32 = scalar_select %p31, %s30, 0
      %s33 = smul.u32 2, %s32
      %s35 = ssub.s32 256, 256
      %36 = vsyncadd [#allocation6], %s35
      %s37 = smul.addr %s33, 128
      %s38 = scalar_lea.hbm %s1, %s37
      %s39 = sshll.u32 [#allocation5], 4
      %s40 = int_to_ptr.vmem [resolvable:$true] %s39
      %45 = dma.hbm_to_vmem [thread:$0]  %s38, 256, %s40, [#allocation6], 128, 128, 8
    $region9: #{tpu_custom_call.1} parent=1 // pred_fallthru
      _
    // Predicated region
    $region10: #{tpu_custom_call.1} parent=1 // pred_check
      _
    $region11: #{tpu_custom_call.1} parent=1 // pred_check_branch
      %47 = sbr.rel (0) target = $region13
    $region12: #{tpu_custom_call.1} parent=1 // pred_region
      %48 = dma.done [#allocation3], 256
    $region13: #{tpu_custom_call.1} parent=1 // pred_fallthru
      _
    // Predicated region
    $region14: #{tpu_custom_call.1} parent=1 // pred_check
      _
    $region15: #{tpu_custom_call.1} parent=1 // pred_check_branch
      %50 = sbr.rel (0) target = $region17
    $region16: #{tpu_custom_call.1} parent=1 // pred_region
      %51 = dma.done [#allocation6], 256
    $region17: #{tpu_custom_call.1} parent=1 // pred_fallthru
      _
    %s52 = sadd.s32 0, 0
    %p53 = scmp.lt.s32.totalorder %s52, 0
    %s54 = scalar_select %p53, %s52, 0
    %s55 = smul.u32 2, %s54
    %s56 = sadd.s32 0, 0
    %p57 = scmp.lt.s32.totalorder %s56, 0
    %s58 = scalar_select %p57, %s56, 0
    %s59 = smul.u32 2, %s58
    %p60 = scmp.eq.s32.totalorder 0, 0
    // Predicated region
    $region18: #{tpu_custom_call.1} parent=1 // pred_check
      %p61 = pneg %p60
    $region19: #{tpu_custom_call.1} parent=1 // pred_check_branch
      %63 = sbr.rel (%p61) target = $region21
    $region20: #{tpu_custom_call.1} parent=1 // pred_region
      %64 = vst [vmem:[#allocation7] sm:$0xff] 0.0
    $region21: #{tpu_custom_call.1} parent=1 // pred_fallthru
      _
    %v65 = vld [vmem:[#allocation2] sm:$0xff]
    %v66 = vld [vmem:[#allocation2 + $0x8] sm:$0xff]
    %v67 = vld [vmem:[#allocation5] sm:$0xff]
    %v68 = vld [vmem:[#allocation5 + $0x8] sm:$0xff]
    %v69 = vsub.f32 %v65, %v67
    %v70 = vsub.f32 %v66, %v68
    %v71 = vmul.f32 %v69, %v69
    %v72 = vmul.f32 %v70, %v70
    %v73 = vld [vmem:[#allocation7] sm:$0xff]
    %v74 = vadd.f32 %v71, %v72
    %v75 = vadd.f32 %v73, %v74
    %76 = vst [vmem:[#allocation7] sm:$0xff] %v75
    // Predicated region
    $region22: #{tpu_custom_call.1} parent=1 // pred_check
      _
    $region23: #{tpu_custom_call.1} parent=1 // pred_check_branch
      %78 = sbr.rel (0) target = $region25
    $region24: #{tpu_custom_call.1} parent=1 // pred_region
      %s80 = ssub.s32 128, 128
      %81 = vsyncadd [#allocation4], %s80
      %s83 = sshll.u32 [#allocation7], 4
      %s84 = int_to_ptr.vmem [resolvable:$true] %s83
      %86 = dma.vmem_to_hbm [thread:$0]  %s84, 128, %s2, [#allocation4]
    $region25: #{tpu_custom_call.1} parent=1 // pred_fallthru
      _
    // Predicated region
    $region26: #{tpu_custom_call.1} parent=1 // pred_check
      _
    $region27: #{tpu_custom_call.1} parent=1 // pred_check_branch
      %88 = sbr.rel (0) target = $region29
    $region28: #{tpu_custom_call.1} parent=1 // pred_region
      %89 = dma.done [#allocation4], 128
    $region29: #{tpu_custom_call.1} parent=1 // pred_fallthru
      _
    %90 = vsyncpa [#allocation3], 1
    %91 = vsyncpa [#allocation6], 1
    %92 = vsyncpa [#allocation4], 1

</llo_original>
